<compile_context>
chip_gen: v7x
topology: tpu7x:2x2x1
jax: 0.10.0
libtpu: 0.0.40
codegen_flags: <defaults>
</compile_context>

<pallas_src>
import functools

import jax
import jax.numpy as jnp
from jax.experimental import pallas as pl
from jax.experimental.pallas import tpu as pltpu

_LANE = 128  # vreg lane width / MXU column granularity


def _round_up(n, m):
    return ((n + m - 1) // m) * m


def _pad_axis_to(a, axis, mult):
    """Zero-pad `axis` of `a` up to a multiple of `mult`."""
    pad = (-a.shape[axis]) % mult
    if pad == 0:
        return a
    widths = [(0, 0)] * a.ndim
    widths[axis] = (0, pad)
    return jnp.pad(a, widths)


def prepare_mlp_params(w1, w2, dtype=jnp.bfloat16):
    """One-time parameter prep (do this at load time, not per forward call).

    w1: [hidden, dim]  (PyTorch nn.Linear layout)  ->  [Dp, Hp]  (in, out)
    w2: [out,   hidden]                            ->  [Hp, Op]  (in, out)
    Zero-padded to lane multiples and cast to bf16.
    """
    w1t = _pad_axis_to(_pad_axis_to(w1.T, 0, _LANE), 1, _LANE).astype(dtype)
    w2t = _pad_axis_to(_pad_axis_to(w2.T, 0, _LANE), 1, _LANE).astype(dtype)
    return w1t, w2t


def mlp_kernel(x_ref, w1_ref, w2_ref, o_ref):
    # x_ref : [TM, Dp]  bf16   (one batch tile, pipelined)
    # w1_ref: [Dp, Hp]  bf16   (resident in VMEM, already transposed)
    # w2_ref: [Hp, Op]  bf16   (resident in VMEM, already transposed)
    # o_ref : [TM, Op]  output dtype
    #
    # Canonical NN contraction -> straight MXU passes, f32 accumulation.
    h = jnp.dot(x_ref[...], w1_ref[...], preferred_element_type=jnp.float32)
    h = h.astype(jnp.bfloat16)  # pure-bf16 second MXU pass, half vreg pressure
    y = jnp.dot(h, w2_ref[...], preferred_element_type=jnp.float32)
    # ReLU in f32, lane-dense unmasked store.
    o_ref[...] = jnp.maximum(y, 0.0).astype(o_ref.dtype)


@functools.partial(jax.jit, static_argnames=("out_dim", "tm"))
def mlp_forward(x, w1t, w2t, *, out_dim, tm=128):
    """x: [B, dim] (any float dtype); w1t/w2t: outputs of prepare_mlp_params."""
    B, dim = x.shape
    Dp, Hp = w1t.shape
    Hp2, Op = w2t.shape
    assert Hp == Hp2, "w1t/w2t hidden dims disagree"
    assert Dp >= dim and Op >= out_dim

    # Batch tile: multiple of 8 sublanes, at most `tm`.
    tm_eff = min(tm, _round_up(B, 8))

    # Per-call work on x only: zero-pad feature axis to Dp, batch to a tile
    # multiple, and cast to bf16 (halves the x DMA bytes).
    x_p = _pad_axis_to(_pad_axis_to(x, 1, Dp), 0, tm_eff).astype(jnp.bfloat16)
    Bp = x_p.shape[0]
    grid = (Bp // tm_eff,)

    out_dtype = x.dtype
    out_isize = jnp.dtype(out_dtype).itemsize

    flops = 2 * Bp * (Dp * Hp + Hp * Op)
    bytes_accessed = (2 * Bp * Dp            # x (bf16)
                      + 2 * (Dp * Hp + Hp * Op)  # weights (bf16)
                      + out_isize * Bp * Op)     # output

    # VMEM: double-buffered x/out tiles + resident weights (conservatively
    # counted double-buffered) + 50% headroom.  Clamp so we never ask for more
    # than ~48 MiB (v7x has only 64 MiB physical) but allow >32 MiB when the
    # footprint needs it on v5e/v6e.
    resident = (2 * tm_eff * Dp * 2            # x tiles, bf16, double-buffered
                + 2 * tm_eff * Op * out_isize  # out tiles, double-buffered
                + 2 * (Dp * Hp + Hp * Op) * 2)  # weights, bf16
    vmem_limit = min(48 * 1024 * 1024,
                     max(32 * 1024 * 1024, int(resident * 1.5)))

    y_p = pl.pallas_call(
        mlp_kernel,
        out_shape=jax.ShapeDtypeStruct((Bp, Op), out_dtype),
        grid_spec=pltpu.PrefetchScalarGridSpec(
            num_scalar_prefetch=0,
            grid=grid,
            in_specs=[
                # x: one batch tile per grid step (software-pipelined).
                pl.BlockSpec((tm_eff, Dp), lambda i: (i, 0)),
                # Weights: constant index_map along the batch axis -> stay
                # resident in VMEM across grid steps (no re-DMA).
                pl.BlockSpec((Dp, Hp), lambda i: (0, 0)),
                pl.BlockSpec((Hp, Op), lambda i: (0, 0)),
            ],
            out_specs=pl.BlockSpec((tm_eff, Op), lambda i: (i, 0)),
        ),
        compiler_params=pltpu.CompilerParams(
            # Batch axis is embarrassingly parallel -> megacore-shardable.
            dimension_semantics=("parallel",),
            vmem_limit_bytes=vmem_limit,
        ),
        cost_estimate=pl.CostEstimate(
            flops=flops, transcendentals=0, bytes_accessed=bytes_accessed),
    )(x_p, w1t, w2t)

    # Strip padding (no-op slice when already aligned).
    return y_p[:B, :out_dim]


if __name__ == "__main__":
    key = jax.random.PRNGKey(0)
    kx, k1, k2 = jax.random.split(key, 3)

    # Lane-dense demo shapes: feature dims multiples of 128 (hidden = 256 for
    # the 256-wide v6e/v7x MXU), batch gives a 4-step even parallel grid.
    B, dim, hidden_dim, out_dim = 512, 128, 256, 128

    x = jax.random.normal(kx, (B, dim), dtype=jnp.float32)
    # nn.Linear weight shape is [out_features, in_features].
    w1 = jax.random.normal(k1, (hidden_dim, dim), dtype=jnp.float32) * 0.1
    w2 = jax.random.normal(k2, (out_dim, hidden_dim), dtype=jnp.float32) * 0.1

    # One-time parameter prep (transpose + pad + bf16 cast).
    w1t, w2t = prepare_mlp_params(w1, w2)

    y = mlp_forward(x, w1t, w2t, out_dim=out_dim)
    jax.block_until_ready(y)
    assert y.shape == (B, out_dim)

    # Reference 1: identical bf16-operand / f32-accumulate math in plain JAX.
    def ref_bf16(x, w1, w2):
        xb = x.astype(jnp.bfloat16)
        h = jnp.dot(xb, w1.T.astype(jnp.bfloat16),
                    preferred_element_type=jnp.float32).astype(jnp.bfloat16)
        yv = jnp.dot(h, w2.T.astype(jnp.bfloat16),
                     preferred_element_type=jnp.float32)
        return jnp.maximum(yv, 0.0).astype(x.dtype)

    y_ref = ref_bf16(x, w1, w2)
    assert jnp.allclose(y, y_ref, atol=1e-2, rtol=1e-2), \
        float(jnp.max(jnp.abs(y - y_ref)))

    # Reference 2: exact f32 PyTorch math (loose tolerance: bf16 MXU operands).
    y_f32 = jnp.maximum((x @ w1.T) @ w2.T, 0.0)
    assert jnp.allclose(y, y_f32, atol=0.1, rtol=0.1), \
        float(jnp.max(jnp.abs(y - y_f32)))

    # Also exercise the zero-padding path with small, unaligned shapes
    # (the original test-sized configuration).
    xs = jax.random.normal(kx, (8, 32), dtype=jnp.float32)
    w1s = jax.random.normal(k1, (64, 32), dtype=jnp.float32) * 0.1
    w2s = jax.random.normal(k2, (16, 64), dtype=jnp.float32) * 0.1
    w1st, w2st = prepare_mlp_params(w1s, w2s)
    ys = mlp_forward(xs, w1st, w2st, out_dim=16)
    jax.block_until_ready(ys)
    ys_f32 = jnp.maximum((xs @ w1s.T) @ w2s.T, 0.0)
    assert ys.shape == (8, 16)
    assert jnp.allclose(ys, ys_f32, atol=0.1, rtol=0.1), \
        float(jnp.max(jnp.abs(ys - ys_f32)))

    print("KERNEL_OK")
</pallas_src>

<mosaic_0001>
module attributes {stable_mosaic.version = 11 : i64} {
  func.func @mlp_kernel(%arg0: i32, %arg1: memref<128x128xbf16, #tpu.memory_space<vmem>>, %arg2: memref<128x256xbf16, #tpu.memory_space<vmem>>, %arg3: memref<256x128xbf16, #tpu.memory_space<vmem>>, %arg4: memref<128x128xf32, #tpu.memory_space<vmem>>) attributes {dimension_semantics = [#tpu.dimension_semantics<parallel>], iteration_bounds = array<i64: 4>, scalar_prefetch = 0 : i64, scratch_operands = 0 : i64, tpu.core_type = #tpu.core_type<tc>, window_params = [{transform_indices = @transform_0, window_bounds = array<i64: 128, 128>}, {pipeline_mode = #tpu.pipeline_mode<synchronous>, transform_indices = @transform_1, window_bounds = array<i64: 128, 256>}, {pipeline_mode = #tpu.pipeline_mode<synchronous>, transform_indices = @transform_2, window_bounds = array<i64: 256, 128>}, {transform_indices = @transform_3, window_bounds = array<i64: 128, 128>}]} {
    %c0 = arith.constant 0 : index
    %c0_0 = arith.constant 0 : index
    %0 = vector.load %arg1[%c0, %c0_0] : memref<128x128xbf16, #tpu.memory_space<vmem>>, vector<128x128xbf16>
    %c0_1 = arith.constant 0 : index
    %c0_2 = arith.constant 0 : index
    %1 = vector.load %arg2[%c0_1, %c0_2] : memref<128x256xbf16, #tpu.memory_space<vmem>>, vector<128x256xbf16>
    %cst = arith.constant dense<0.000000e+00> : vector<128x256xf32>
    %2 = tpu.matmul %0, %1, %cst {dimension_numbers = #tpu.dot_dimension_numbers<[1], [0], [0], [1], [0, 0, 1, 1], [], []>} : vector<128x128xbf16>, vector<128x256xbf16>, vector<128x256xf32> -> vector<128x256xf32>
    %3 = arith.truncf %2 : vector<128x256xf32> to vector<128x256xbf16>
    %c0_3 = arith.constant 0 : index
    %c0_4 = arith.constant 0 : index
    %4 = vector.load %arg3[%c0_3, %c0_4] : memref<256x128xbf16, #tpu.memory_space<vmem>>, vector<256x128xbf16>
    %cst_5 = arith.constant dense<0.000000e+00> : vector<128x128xf32>
    %5 = tpu.matmul %3, %4, %cst_5 {dimension_numbers = #tpu.dot_dimension_numbers<[1], [0], [0], [1], [0, 0, 1, 1], [], []>} : vector<128x256xbf16>, vector<256x128xbf16>, vector<128x128xf32> -> vector<128x128xf32>
    %cst_6 = arith.constant 0.000000e+00 : f32
    %6 = vector.broadcast %cst_6 : f32 to vector<128x128xf32>
    %7 = arith.maximumf %5, %6 : vector<128x128xf32>
    %c0_7 = arith.constant 0 : index
    %c0_8 = arith.constant 0 : index
    %8 = vector.load %arg4[%c0_7, %c0_8] : memref<128x128xf32, #tpu.memory_space<vmem>>, vector<128x128xf32>
    tpu.vector_store %arg4[%c0_7, %c0_8], %7 {strides = array<i32>} : memref<128x128xf32, #tpu.memory_space<vmem>>, vector<128x128xf32>,
    return
  }
  func.func @transform_0(%arg0: i32) -> (i32, i32) {
    %c0_i32 = arith.constant 0 : i32
    %c0_i32_0 = arith.constant 0 : i32
    return %arg0, %c0_i32 : i32, i32
  }
  func.func @transform_1(%arg0: i32) -> (i32, i32) {
    %c0_i32 = arith.constant 0 : i32
    %c0_i32_0 = arith.constant 0 : i32
    %c0_i32_1 = arith.constant 0 : i32
    return %c0_i32, %c0_i32_0 : i32, i32
  }
  func.func @transform_2(%arg0: i32) -> (i32, i32) {
    %c0_i32 = arith.constant 0 : i32
    %c0_i32_0 = arith.constant 0 : i32
    %c0_i32_1 = arith.constant 0 : i32
    return %c0_i32, %c0_i32_0 : i32, i32
  }
  func.func @transform_3(%arg0: i32) -> (i32, i32) {
    %c0_i32 = arith.constant 0 : i32
    %c0_i32_0 = arith.constant 0 : i32
    return %arg0, %c0_i32 : i32, i32
  }
}

</mosaic_0001>

<llo_original>
// kernel: mlp_forward.1
$region0: #{mlp_forward.1}
  #allocation0 [shape = 'u32[]', space=smem, size = 0x4, offset = 0x4, fixed_abs, tag = 'smem constant byte address 0x4 - core index']
  #allocation1 [shape = 'u32[144,128]{1,0:T(1,128)}', space=vmem, size = 0x12000, scoped, tag = 'internal scratch']
  %s0 = inlined_call_operand.vmem [shape: bf16[512,128], index: 0, kind: input, shape index: {}]
  %s1 = inlined_call_operand.vmem [shape: bf16[128,256], index: 1, kind: input, shape index: {}]
  %s2 = inlined_call_operand.vmem [shape: bf16[256,128], index: 2, kind: input, shape index: {}]
  %s3 = inlined_call_operand.hbm [shape: f32[512,128], index: 3, kind: output, shape index: {}]
  %s4 = sld [smem:[#allocation0]]
  $region45: #{mlp_forward.1} parent=0
    _
  %s6 = ssub.s32 1, %s4
  %s7 = scalar_select 0, %s6, %s4
  $region1: #{mlp_forward.1} parent=0
    #allocation2 [shape = 'u8[131072]{0}', space=vmem, size = 0x20000, scoped, tag = 'output window, operand 0']
    #allocation3 [shape = 's32[2]{0}', space=sflag, size = 0x8, scoped, tag = 'scoped memory for mlp_forward.1']
    %8 = vsyncpa [#allocation3], 0
    %s9 = scalar_lea.sflag [#allocation3], 1
    %10 = vsyncpa %s9, 0
    loop: start=0, step=1, limit=6
    $region2: #{mlp_forward.1} parent=1 // loop_pre_header
      _
    $region3: #{mlp_forward.1} parent=1 // loop_header
      %s12 = sphi 0, %s16
      %p13 = scmp.ge.s32.totalorder %s12, 6
      %s22 = sphi 0, %s24
      %s25 = sphi 0, %s22
      %s26 = sphi 0, %s25
      %s42 = sphi 0, %s26
      %s46 = sphi 0, %s46
      %s48 = sphi 0, %s46
      %s49 = sphi 0, %s48
      %s63 = sphi 0, %s49
      %s67 = sphi 0, %s67
      %s69 = sphi 0, %s67
      %s70 = sphi 0, %s69
      %s84 = sphi 0, %s70
      %s90 = sphi 0, %s92
      %s93 = sphi 0, %s90
      %s94 = sphi 0, %s93
      %s110 = sphi 0, %s94
    $region4: #{mlp_forward.1} parent=1 // loop_header_branch
      %15 = sbr.rel (%p13) target = $region8
    $region5: #{mlp_forward.1} parent=1 // loop_body
      %s17 = ssub.s32 %s12, 1
      %s18 = ssub.s32 %s12, 2
      %s19 = sadd.s32 %s12, 1
      %s20 = ssub.s32 %s12, %s19
      %p21 = scmp.eq.s32.totalorder %s20, 0
      %s23 = sadd.s32 %s22, 1
      %s24 = scalar_select %p21, %s22, %s23
      %p27 = pneg %p21
      %p28 = scmp.eq.s32.totalorder %s12, 3
      %p29 = por %p27, %p28
      %p30 = scmp.ne.s32.totalorder %s22, %s25
      %p31 = scmp.eq.s32.totalorder %s12, 0
      %p32 = por %p30, %p31
      %p33 = scmp.ne.s32.totalorder %s22, %s25
      %p34 = scmp.eq.s32.totalorder %s17, 3
      %p35 = por %p33, %p34
      %p36 = scmp.ne.s32.totalorder %s25, %s26
      %p37 = scmp.eq.s32.totalorder %s17, 0
      %p38 = por %p36, %p37
      %p39 = scmp.ne.s32.totalorder %s25, %s26
      %p40 = scmp.eq.s32.totalorder %s18, 3
      %p41 = por %p39, %p40
      %p43 = scmp.ne.s32.totalorder %s26, %s42
      %p44 = scmp.eq.s32.totalorder %s18, 0
      %p45 = por %p43, %p44
      %s47 = sadd.s32 %s46, 1
      %p50 = scmp.eq.s32.totalorder %s12, 3
      %p51 = scmp.ne.s32.totalorder %s46, %s48
      %p52 = scmp.eq.s32.totalorder %s12, 0
      %p53 = por %p51, %p52
      %p54 = scmp.ne.s32.totalorder %s46, %s48
      %p55 = scmp.eq.s32.totalorder %s17, 3
      %p56 = por %p54, %p55
      %p57 = scmp.ne.s32.totalorder %s48, %s49
      %p58 = scmp.eq.s32.totalorder %s17, 0
      %p59 = por %p57, %p58
      %p60 = scmp.ne.s32.totalorder %s48, %s49
      %p61 = scmp.eq.s32.totalorder %s18, 3
      %p62 = por %p60, %p61
      %p64 = scmp.ne.s32.totalorder %s49, %s63
      %p65 = scmp.eq.s32.totalorder %s18, 0
      %p66 = por %p64, %p65
      %s68 = sadd.s32 %s67, 1
      %p71 = scmp.eq.s32.totalorder %s12, 3
      %p72 = scmp.ne.s32.totalorder %s67, %s69
      %p73 = scmp.eq.s32.totalorder %s12, 0
      %p74 = por %p72, %p73
      %p75 = scmp.ne.s32.totalorder %s67, %s69
      %p76 = scmp.eq.s32.totalorder %s17, 3
      %p77 = por %p75, %p76
      %p78 = scmp.ne.s32.totalorder %s69, %s70
      %p79 = scmp.eq.s32.totalorder %s17, 0
      %p80 = por %p78, %p79
      %p81 = scmp.ne.s32.totalorder %s69, %s70
      %p82 = scmp.eq.s32.totalorder %s18, 3
      %p83 = por %p81, %p82
      %p85 = scmp.ne.s32.totalorder %s70, %s84
      %p86 = scmp.eq.s32.totalorder %s18, 0
      %p87 = por %p85, %p86
      %s88 = ssub.s32 %s12, %s19
      %p89 = scmp.eq.s32.totalorder %s88, 0
      %s91 = sadd.s32 %s90, 1
      %s92 = scalar_select %p89, %s90, %s91
      %p95 = pneg %p89
      %p96 = scmp.eq.s32.totalorder %s12, 3
      %p97 = por %p95, %p96
      %p98 = scmp.ne.s32.totalorder %s90, %s93
      %p99 = scmp.eq.s32.totalorder %s12, 0
      %p100 = por %p98, %p99
      %p101 = scmp.ne.s32.totalorder %s90, %s93
      %p102 = scmp.eq.s32.totalorder %s17, 3
      %p103 = por %p101, %p102
      %p104 = scmp.ne.s32.totalorder %s93, %s94
      %p105 = scmp.eq.s32.totalorder %s17, 0
      %p106 = por %p104, %p105
      %p107 = scmp.ne.s32.totalorder %s93, %s94
      %p108 = scmp.eq.s32.totalorder %s18, 3
      %p109 = por %p107, %p108
      %p111 = scmp.ne.s32.totalorder %s94, %s110
      %p112 = scmp.eq.s32.totalorder %s18, 0
      %p113 = por %p111, %p112
      %p114 = scmp.le.s32.totalorder 1, %s12
      %p115 = scmp.lt.s32.totalorder %s12, 5
      %p116 = pnand %p114, %p115
      %p117 = pneg %p116
      // Predicated region
      $region9: #{mlp_forward.1} parent=5 // pred_check
        _
      $region10: #{mlp_forward.1} parent=5 // pred_check_branch
        %119 = sbr.rel (%p116) target = $region12
      $region11: #{mlp_forward.1} parent=5 // pred_region
        %s120 = ssub.s32 %s12, 1
        // Predicated region
        $region13: #{mlp_forward.1} parent=11 // pred_check
          %p121 = pneg %p59
        $region14: #{mlp_forward.1} parent=11 // pred_check_branch
          %123 = sbr.rel (%p121) target = $region16
        $region15: #{mlp_forward.1} parent=11 // pred_region
          _
        $region16: #{mlp_forward.1} parent=11 // pred_fallthru
          _
        // Predicated region
        $region17: #{mlp_forward.1} parent=11 // pred_check
          %p124 = pneg %p80
        $region18: #{mlp_forward.1} parent=11 // pred_check_branch
          %126 = sbr.rel (%p124) target = $region20
        $region19: #{mlp_forward.1} parent=11 // pred_region
          _
        $region20: #{mlp_forward.1} parent=11 // pred_fallthru
          _
      $region12: #{mlp_forward.1} parent=5 // pred_fallthru
        _
      %p127 = scmp.lt.s32.totalorder %s12, 4
      // Predicated region
      $region21: #{mlp_forward.1} parent=5 // pred_check
        %p128 = pneg %p127
      $region22: #{mlp_forward.1} parent=5 // pred_check_branch
        %130 = sbr.rel (%p128) target = $region24
      $region23: #{mlp_forward.1} parent=5 // pred_region
        // Predicated region
        $region25: #{mlp_forward.1} parent=23 // pred_check
          %p131 = pneg %p32
        $region26: #{mlp_forward.1} parent=23 // pred_check_branch
          %133 = sbr.rel (%p131) target = $region28
        $region27: #{mlp_forward.1} parent=23 // pred_region
          %s134 = smul.u32 16, %s12
          %p135 = scmp.lt.s32.totalorder %s134, 63
          %s136 = scalar_select %p135, %s134, 63
          %s137 = smul.addr %s136, 4
          %s138 = scalar_lea.vmem %s0, %s137
          %s139 = smul.u32 16, %s12
        $region28: #{mlp_forward.1} parent=23 // pred_fallthru
          _
      $region24: #{mlp_forward.1} parent=5 // pred_fallthru
        _
      %p140 = scmp.le.s32.totalorder 1, %s12
      %p141 = scmp.lt.s32.totalorder %s12, 5
      %p142 = pnand %p140, %p141
      %p143 = pneg %p142
      // Predicated region
      $region29: #{mlp_forward.1} parent=5 // pred_check
        _
      $region30: #{mlp_forward.1} parent=5 // pred_check_branch
        %145 = sbr.rel (%p142) target = $region32
      $region31: #{mlp_forward.1} parent=5 // pred_region
        %s146 = ssub.s32 %s12, 1
        %s147 = smul.u32 16, %s17
        %p148 = scmp.lt.s32.totalorder %s147, 63
        %s149 = scalar_select %p148, %s147, 63
        %s150 = smul.addr %s149, 4
        %s151 = scalar_lea.vmem %s0, %s150
        %p152 = pneg %p38
        %p153 = pneg %p35
        %p154 = pneg %p59
        %p155 = pneg %p56
        %p156 = pneg %p80
        %p157 = pneg %p77
        %p158 = pneg %p106
        %p159 = pneg %p103
        %s160 = sand.u32 %s93, 1
        %s161 = scalar_lea.sflag [#allocation3], %s160
        %s162 = sand.u32 %s93, 1
        %s163 = smul.addr %s162, 128
        %s164 = scalar_lea.vmem [#allocation2], %s163
        %s165 = smul.u32 16, %s17
        %p166 = scmp.lt.s32.totalorder %s165, 63
        %s167 = scalar_select %p166, %s165, 63
        %s168 = smul.addr %s167, 4
        %s169 = scalar_lea.vmem %s0, %s168
        %s170 = smul.u32 16, %s17
        %s171 = smul.u32 16, %s17
        %v173 = vld [vmem:[%s169] sm:$0xf]
        %v174 = vld [vmem:[%s169 + $0x4] sm:$0xf]
        %v175 = vld [vmem:[%s169 + $0x8] sm:$0xf]
        %v176 = vld [vmem:[%s169 + $0xc] sm:$0xf]
        %v177 = vld [vmem:[%s169 + $0x10] sm:$0xf]
        %v178 = vld [vmem:[%s169 + $0x14] sm:$0xf]
        %v179 = vld [vmem:[%s169 + $0x18] sm:$0xf]
        %v180 = vld [vmem:[%s169 + $0x1c] sm:$0xf]
        %v181 = vld [vmem:[%s169 + $0x20] sm:$0xf]
        %v182 = vld [vmem:[%s169 + $0x24] sm:$0xf]
        %v183 = vld [vmem:[%s169 + $0x28] sm:$0xf]
        %v184 = vld [vmem:[%s169 + $0x2c] sm:$0xf]
        %v185 = vld [vmem:[%s169 + $0x30] sm:$0xf]
        %v186 = vld [vmem:[%s169 + $0x34] sm:$0xf]
        %v187 = vld [vmem:[%s169 + $0x38] sm:$0xf]
        %v188 = vld [vmem:[%s169 + $0x3c] sm:$0xf]
        %v189 = vld [vmem:[%s1] sm:$0xff]
        %v190 = vld [vmem:[%s1 + $0x8] sm:$0xff]
        %v191 = vld [vmem:[%s1 + $0x10] sm:$0xff]
        %v192 = vld [vmem:[%s1 + $0x18] sm:$0xff]
        %v193 = vld [vmem:[%s1 + $0x20] sm:$0xff]
        %v194 = vld [vmem:[%s1 + $0x28] sm:$0xff]
        %v195 = vld [vmem:[%s1 + $0x30] sm:$0xff]
        %v196 = vld [vmem:[%s1 + $0x38] sm:$0xff]
        %v197 = vld [vmem:[%s1 + $0x40] sm:$0xff]
        %v198 = vld [vmem:[%s1 + $0x48] sm:$0xff]
        %v199 = vld [vmem:[%s1 + $0x50] sm:$0xff]
        %v200 = vld [vmem:[%s1 + $0x58] sm:$0xff]
        %v201 = vld [vmem:[%s1 + $0x60] sm:$0xff]
        %v202 = vld [vmem:[%s1 + $0x68] sm:$0xff]
        %v203 = vld [vmem:[%s1 + $0x70] sm:$0xff]
        %v204 = vld [vmem:[%s1 + $0x78] sm:$0xff]
        %v221 = vunpack.c.l.b16 %v173
        %v222 = vunpack.c.l.b16 %v174
        %v223 = vunpack.c.l.b16 %v175
        %v224 = vunpack.c.l.b16 %v176
        %v225 = vunpack.c.l.b16 %v177
        %v226 = vunpack.c.l.b16 %v178
        %v227 = vunpack.c.l.b16 %v179
        %v228 = vunpack.c.l.b16 %v180
        %v229 = vunpack.c.l.b16 %v181
        %v230 = vunpack.c.l.b16 %v182
        %v231 = vunpack.c.l.b16 %v183
        %v232 = vunpack.c.l.b16 %v184
        %v233 = vunpack.c.l.b16 %v185
        %v234 = vunpack.c.l.b16 %v186
        %v235 = vunpack.c.l.b16 %v187
        %v236 = vunpack.c.l.b16 %v188
        %v237 = vpack.c.b16 %v222, %v221
        %v238 = vpack.c.b16 %v224, %v223
        %v239 = vpack.c.b16 %v226, %v225
        %v240 = vpack.c.b16 %v228, %v227
        %v241 = vpack.c.b16 %v230, %v229
        %v242 = vpack.c.b16 %v232, %v231
        %v243 = vpack.c.b16 %v234, %v233
        %v244 = vpack.c.b16 %v236, %v235
        %v269 = vunpack.c.l.b16 %v189
        %v270 = vunpack.c.h.b16 %v189
        %v271 = vunpack.c.l.b16 %v190
        %v272 = vunpack.c.h.b16 %v190
        %v273 = vunpack.c.l.b16 %v191
        %v274 = vunpack.c.h.b16 %v191
        %v275 = vunpack.c.l.b16 %v192
        %v276 = vunpack.c.h.b16 %v192
        %v277 = vunpack.c.l.b16 %v193
        %v278 = vunpack.c.h.b16 %v193
        %v279 = vunpack.c.l.b16 %v194
        %v280 = vunpack.c.h.b16 %v194
        %v281 = vunpack.c.l.b16 %v195
        %v282 = vunpack.c.h.b16 %v195
        %v283 = vunpack.c.l.b16 %v196
        %v284 = vunpack.c.h.b16 %v196
        %v285 = vunpack.c.l.b16 %v197
        %v286 = vunpack.c.h.b16 %v197
        %v287 = vunpack.c.l.b16 %v198
        %v288 = vunpack.c.h.b16 %v198
        %v289 = vunpack.c.l.b16 %v199
        %v290 = vunpack.c.h.b16 %v199
        %v291 = vunpack.c.l.b16 %v200
        %v292 = vunpack.c.h.b16 %v200
        %v293 = vunpack.c.l.b16 %v201
        %v294 = vunpack.c.h.b16 %v201
        %v295 = vunpack.c.l.b16 %v202
        %v296 = vunpack.c.h.b16 %v202
        %v297 = vunpack.c.l.b16 %v203
        %v298 = vunpack.c.h.b16 %v203
        %v299 = vunpack.c.l.b16 %v204
        %v300 = vunpack.c.h.b16 %v204
        %v301 = vpack.c.b16 %v271, %v269
        %v302 = vpack.c.b16 %v272, %v270
        %v303 = vpack.c.b16 %v275, %v273
        %v304 = vpack.c.b16 %v276, %v274
        %v305 = vpack.c.b16 %v279, %v277
        %v306 = vpack.c.b16 %v280, %v278
        %v307 = vpack.c.b16 %v283, %v281
        %v308 = vpack.c.b16 %v284, %v282
        %v309 = vpack.c.b16 %v287, %v285
        %v310 = vpack.c.b16 %v288, %v286
        %v311 = vpack.c.b16 %v291, %v289
        %v312 = vpack.c.b16 %v292, %v290
        %v313 = vpack.c.b16 %v295, %v293
        %v314 = vpack.c.b16 %v296, %v294
        %v315 = vpack.c.b16 %v299, %v297
        %v316 = vpack.c.b16 %v300, %v298
        %333 = vmatprep.subr.bf16.mxu0 %v302
        %334 = vmatpush1.bf16.msra.mxu0 %v301
        %335 = vmatprep.subr.bf16.mxu0 %v304
        %336 = vmatpush1.bf16.msra.mxu0 %v303
        %337 = vmatprep.subr.bf16.mxu0 %v306
        %338 = vmatpush1.bf16.msra.mxu0 %v305
        %339 = vmatprep.subr.bf16.mxu0 %v308
        %340 = vmatpush1.bf16.msra.mxu0 %v307
        %341 = vmatprep.subr.bf16.mxu0 %v310
        %342 = vmatpush1.bf16.msra.mxu0 %v309
        %343 = vmatprep.subr.bf16.mxu0 %v312
        %344 = vmatpush1.bf16.msra.mxu0 %v311
        %345 = vmatprep.subr.bf16.mxu0 %v314
        %346 = vmatpush1.bf16.msra.mxu0 %v313
        %347 = vmatprep.subr.bf16.mxu0 %v316
        %348 = vmatpush1.bf16.msra.mxu0 %v315
        %349 = vmatprep.subr.bf16.mxu0 0
        %350 = vmatpush1.bf16.msra.mxu0 0
        %351 = vmatprep.subr.bf16.mxu0 0
        %352 = vmatpush1.bf16.msra.mxu0 0
        %353 = vmatprep.subr.bf16.mxu0 0
        %354 = vmatpush1.bf16.msra.mxu0 0
        %355 = vmatprep.subr.bf16.mxu0 0
        %356 = vmatpush1.bf16.msra.mxu0 0
        %357 = vmatprep.subr.bf16.mxu0 0
        %358 = vmatpush1.bf16.msra.mxu0 0
        %359 = vmatprep.subr.bf16.mxu0 0
        %360 = vmatpush1.bf16.msra.mxu0 0
        %361 = vmatprep.subr.bf16.mxu0 0
        %362 = vmatpush1.bf16.msra.mxu0 0
        %363 = vmatprep.subr.bf16.mxu0 0
        %364 = vmatpush1.bf16.msra.mxu0 0
        %365 = vmatprep.mubr.bf16.mxu0 0
        %366 = vmatmul.mubr.bf16.gmra.mrb[0].mxu0 %v237
        %v367 = vpop.f32.mrb[0].mxu0
        %v368 = vadd.f32 0.0, %v367
        %v369 = vpop.f32.mrb[0].mxu0
        %v370 = vadd.f32 0.0, %v369
        %v371 = vpop.f32.mrb[0].mxu0
        %v372 = vadd.f32 0.0, %v371
        %v373 = vpop.f32.mrb[0].mxu0
        %v374 = vadd.f32 0.0, %v373
        %375 = vmatprep.mubr.bf16.mxu0 0
        %376 = vmatmul.mubr.bf16.gmra.mrb[0].mxu0 %v238
        %v377 = vpop.f32.mrb[0].mxu0
        %v378 = vadd.f32 0.0, %v377
        %v379 = vpop.f32.mrb[0].mxu0
        %v380 = vadd.f32 0.0, %v379
        %v381 = vpop.f32.mrb[0].mxu0
        %v382 = vadd.f32 0.0, %v381
        %v383 = vpop.f32.mrb[0].mxu0
        %v384 = vadd.f32 0.0, %v383
        %385 = vmatprep.mubr.bf16.mxu0 0
        %386 = vmatmul.mubr.bf16.gmra.mrb[0].mxu0 %v239
        %v387 = vpop.f32.mrb[0].mxu0
        %v388 = vadd.f32 0.0, %v387
        %v389 = vpop.f32.mrb[0].mxu0
        %v390 = vadd.f32 0.0, %v389
        %v391 = vpop.f32.mrb[0].mxu0
        %v392 = vadd.f32 0.0, %v391
        %v393 = vpop.f32.mrb[0].mxu0
        %v394 = vadd.f32 0.0, %v393
        %395 = vmatprep.mubr.bf16.mxu0 0
        %396 = vmatmul.mubr.bf16.gmra.mrb[0].mxu0 %v240
        %v397 = vpop.f32.mrb[0].mxu0
        %v398 = vadd.f32 0.0, %v397
        %v399 = vpop.f32.mrb[0].mxu0
        %v400 = vadd.f32 0.0, %v399
        %v401 = vpop.f32.mrb[0].mxu0
        %v402 = vadd.f32 0.0, %v401
        %v403 = vpop.f32.mrb[0].mxu0
        %v404 = vadd.f32 0.0, %v403
        %405 = vmatprep.mubr.bf16.mxu0 0
        %406 = vmatmul.mubr.bf16.gmra.mrb[0].mxu0 %v241
        %v407 = vpop.f32.mrb[0].mxu0
        %v408 = vadd.f32 0.0, %v407
        %v409 = vpop.f32.mrb[0].mxu0
        %v410 = vadd.f32 0.0, %v409
        %v411 = vpop.f32.mrb[0].mxu0
        %v412 = vadd.f32 0.0, %v411
        %v413 = vpop.f32.mrb[0].mxu0
        %v414 = vadd.f32 0.0, %v413
        %415 = vmatprep.mubr.bf16.mxu0 0
        %416 = vmatmul.mubr.bf16.gmra.mrb[0].mxu0 %v242
        %v417 = vpop.f32.mrb[0].mxu0
        %v418 = vadd.f32 0.0, %v417
        %v419 = vpop.f32.mrb[0].mxu0
        %v420 = vadd.f32 0.0, %v419
        %v421 = vpop.f32.mrb[0].mxu0
        %v422 = vadd.f32 0.0, %v421
        %v423 = vpop.f32.mrb[0].mxu0
        %v424 = vadd.f32 0.0, %v423
        %425 = vmatprep.mubr.bf16.mxu0 0
        %426 = vmatmul.mubr.bf16.gmra.mrb[0].mxu0 %v243
        %v427 = vpop.f32.mrb[0].mxu0
        %v428 = vadd.f32 0.0, %v427
        %v429 = vpop.f32.mrb[0].mxu0
        %v430 = vadd.f32 0.0, %v429
        %v431 = vpop.f32.mrb[0].mxu0
        %v432 = vadd.f32 0.0, %v431
        %v433 = vpop.f32.mrb[0].mxu0
        %v434 = vadd.f32 0.0, %v433
        %435 = vmatprep.mubr.bf16.mxu0 0
        %436 = vmatmul.mubr.bf16.gmra.mrb[0].mxu0 %v244
        %v437 = vpop.f32.mrb[0].mxu0
        %v438 = vadd.f32 0.0, %v437
        %v439 = vpop.f32.mrb[0].mxu0
        %v440 = vadd.f32 0.0, %v439
        %v441 = vpop.f32.mrb[0].mxu0
        %v442 = vadd.f32 0.0, %v441
        %v443 = vpop.f32.mrb[0].mxu0
        %v444 = vadd.f32 0.0, %v443
        %445 = vdwg.mxu0
        %v446 = vpack.c.bf16 %v372, %v368
        %v447 = vpack.c.bf16 %v374, %v370
        %v448 = vpack.c.bf16 %v382, %v378
        %v449 = vpack.c.bf16 %v384, %v380
        %v450 = vpack.c.bf16 %v392, %v388
        %v451 = vpack.c.bf16 %v394, %v390
        %v452 = vpack.c.bf16 %v402, %v398
        %v453 = vpack.c.bf16 %v404, %v400
        %v454 = vpack.c.bf16 %v412, %v408
        %v455 = vpack.c.bf16 %v414, %v410
        %v456 = vpack.c.bf16 %v422, %v418
        %v457 = vpack.c.bf16 %v424, %v420
        %v458 = vpack.c.bf16 %v432, %v428
        %v459 = vpack.c.bf16 %v434, %v430
        %v460 = vpack.c.bf16 %v442, %v438
        %v461 = vpack.c.bf16 %v444, %v440
        %v462 = vld [vmem:[%s2] sm:$0xf]
        %v463 = vld [vmem:[%s2 + $0x4] sm:$0xf]
        %v464 = vld [vmem:[%s2 + $0x8] sm:$0xf]
        %v465 = vld [vmem:[%s2 + $0xc] sm:$0xf]
        %v466 = vld [vmem:[%s2 + $0x10] sm:$0xf]
        %v467 = vld [vmem:[%s2 + $0x14] sm:$0xf]
        %v468 = vld [vmem:[%s2 + $0x18] sm:$0xf]
        %v469 = vld [vmem:[%s2 + $0x1c] sm:$0xf]
        %v470 = vld [vmem:[%s2 + $0x20] sm:$0xf]
        %v471 = vld [vmem:[%s2 + $0x24] sm:$0xf]
        %v472 = vld [vmem:[%s2 + $0x28] sm:$0xf]
        %v473 = vld [vmem:[%s2 + $0x2c] sm:$0xf]
        %v474 = vld [vmem:[%s2 + $0x30] sm:$0xf]
        %v475 = vld [vmem:[%s2 + $0x34] sm:$0xf]
        %v476 = vld [vmem:[%s2 + $0x38] sm:$0xf]
        %v477 = vld [vmem:[%s2 + $0x3c] sm:$0xf]
        %v478 = vld [vmem:[%s2 + $0x40] sm:$0xf]
        %v479 = vld [vmem:[%s2 + $0x44] sm:$0xf]
        %v480 = vld [vmem:[%s2 + $0x48] sm:$0xf]
        %v481 = vld [vmem:[%s2 + $0x4c] sm:$0xf]
        %v482 = vld [vmem:[%s2 + $0x50] sm:$0xf]
        %v483 = vld [vmem:[%s2 + $0x54] sm:$0xf]
        %v484 = vld [vmem:[%s2 + $0x58] sm:$0xf]
        %v485 = vld [vmem:[%s2 + $0x5c] sm:$0xf]
        %v486 = vld [vmem:[%s2 + $0x60] sm:$0xf]
        %v487 = vld [vmem:[%s2 + $0x64] sm:$0xf]
        %v488 = vld [vmem:[%s2 + $0x68] sm:$0xf]
        %v489 = vld [vmem:[%s2 + $0x6c] sm:$0xf]
        %v490 = vld [vmem:[%s2 + $0x70] sm:$0xf]
        %v491 = vld [vmem:[%s2 + $0x74] sm:$0xf]
        %v492 = vld [vmem:[%s2 + $0x78] sm:$0xf]
        %v493 = vld [vmem:[%s2 + $0x7c] sm:$0xf]
        %v526 = vunpack.c.l.b16 %v462
        %v527 = vunpack.c.l.b16 %v463
        %v528 = vunpack.c.l.b16 %v464
        %v529 = vunpack.c.l.b16 %v465
        %v530 = vunpack.c.l.b16 %v466
        %v531 = vunpack.c.l.b16 %v467
        %v532 = vunpack.c.l.b16 %v468
        %v533 = vunpack.c.l.b16 %v469
        %v534 = vunpack.c.l.b16 %v470
        %v535 = vunpack.c.l.b16 %v471
        %v536 = vunpack.c.l.b16 %v472
        %v537 = vunpack.c.l.b16 %v473
        %v538 = vunpack.c.l.b16 %v474
        %v539 = vunpack.c.l.b16 %v475
        %v540 = vunpack.c.l.b16 %v476
        %v541 = vunpack.c.l.b16 %v477
        %v542 = vunpack.c.l.b16 %v478
        %v543 = vunpack.c.l.b16 %v479
        %v544 = vunpack.c.l.b16 %v480
        %v545 = vunpack.c.l.b16 %v481
        %v546 = vunpack.c.l.b16 %v482
        %v547 = vunpack.c.l.b16 %v483
        %v548 = vunpack.c.l.b16 %v484
        %v549 = vunpack.c.l.b16 %v485
        %v550 = vunpack.c.l.b16 %v486
        %v551 = vunpack.c.l.b16 %v487
        %v552 = vunpack.c.l.b16 %v488
        %v553 = vunpack.c.l.b16 %v489
        %v554 = vunpack.c.l.b16 %v490
        %v555 = vunpack.c.l.b16 %v491
        %v556 = vunpack.c.l.b16 %v492
        %v557 = vunpack.c.l.b16 %v493
        %v558 = vpack.c.b16 %v527, %v526
        %v559 = vpack.c.b16 %v529, %v528
        %v560 = vpack.c.b16 %v531, %v530
        %v561 = vpack.c.b16 %v533, %v532
        %v562 = vpack.c.b16 %v535, %v534
        %v563 = vpack.c.b16 %v537, %v536
        %v564 = vpack.c.b16 %v539, %v538
        %v565 = vpack.c.b16 %v541, %v540
        %v566 = vpack.c.b16 %v543, %v542
        %v567 = vpack.c.b16 %v545, %v544
        %v568 = vpack.c.b16 %v547, %v546
        %v569 = vpack.c.b16 %v549, %v548
        %v570 = vpack.c.b16 %v551, %v550
        %v571 = vpack.c.b16 %v553, %v552
        %v572 = vpack.c.b16 %v555, %v554
        %v573 = vpack.c.b16 %v557, %v556
        %590 = vmatprep.subr.bf16.mxu0 0
        %591 = vmatpush1.bf16.msra.mxu0 %v558
        %592 = vmatprep.subr.bf16.mxu0 0
        %593 = vmatpush1.bf16.msra.mxu0 %v559
        %594 = vmatprep.subr.bf16.mxu0 0
        %595 = vmatpush1.bf16.msra.mxu0 %v560
        %596 = vmatprep.subr.bf16.mxu0 0
        %597 = vmatpush1.bf16.msra.mxu0 %v561
        %598 = vmatprep.subr.bf16.mxu0 0
        %599 = vmatpush1.bf16.msra.mxu0 %v562
        %600 = vmatprep.subr.bf16.mxu0 0
        %601 = vmatpush1.bf16.msra.mxu0 %v563
        %602 = vmatprep.subr.bf16.mxu0 0
        %603 = vmatpush1.bf16.msra.mxu0 %v564
        %604 = vmatprep.subr.bf16.mxu0 0
        %605 = vmatpush1.bf16.msra.mxu0 %v565
        %606 = vmatprep.subr.bf16.mxu0 0
        %607 = vmatpush1.bf16.msra.mxu0 %v566
        %608 = vmatprep.subr.bf16.mxu0 0
        %609 = vmatpush1.bf16.msra.mxu0 %v567
        %610 = vmatprep.subr.bf16.mxu0 0
        %611 = vmatpush1.bf16.msra.mxu0 %v568
        %612 = vmatprep.subr.bf16.mxu0 0
        %613 = vmatpush1.bf16.msra.mxu0 %v569
        %614 = vmatprep.subr.bf16.mxu0 0
        %615 = vmatpush1.bf16.msra.mxu0 %v570
        %616 = vmatprep.subr.bf16.mxu0 0
        %617 = vmatpush1.bf16.msra.mxu0 %v571
        %618 = vmatprep.subr.bf16.mxu0 0
        %619 = vmatpush1.bf16.msra.mxu0 %v572
        %620 = vmatprep.subr.bf16.mxu0 0
        %621 = vmatpush1.bf16.msra.mxu0 %v573
        %622 = vmatprep.mubr.bf16.mxu0 %v447
        %623 = vmatmul.mubr.bf16.gmra.mrb[0].mxu0 %v446
        %v624 = vpop.f32.mrb[0].mxu0
        %v625 = vadd.f32 0.0, %v624
        %v626 = vpop.f32.mrb[0].mxu0
        %v627 = vpop.f32.mrb[0].mxu0
        %v628 = vadd.f32 0.0, %v627
        %v629 = vpop.f32.mrb[0].mxu0
        %630 = vmatprep.mubr.bf16.mxu0 %v449
        %631 = vmatmul.mubr.bf16.gmra.mrb[0].mxu0 %v448
        %v632 = vpop.f32.mrb[0].mxu0
        %v633 = vadd.f32 0.0, %v632
        %v634 = vpop.f32.mrb[0].mxu0
        %v635 = vpop.f32.mrb[0].mxu0
        %v636 = vadd.f32 0.0, %v635
        %v637 = vpop.f32.mrb[0].mxu0
        %638 = vmatprep.mubr.bf16.mxu0 %v451
        %639 = vmatmul.mubr.bf16.gmra.mrb[0].mxu0 %v450
        %v640 = vpop.f32.mrb[0].mxu0
        %v641 = vadd.f32 0.0, %v640
        %v642 = vpop.f32.mrb[0].mxu0
        %v643 = vpop.f32.mrb[0].mxu0
        %v644 = vadd.f32 0.0, %v643
        %v645 = vpop.f32.mrb[0].mxu0
        %646 = vmatprep.mubr.bf16.mxu0 %v453
        %647 = vmatmul.mubr.bf16.gmra.mrb[0].mxu0 %v452
        %v648 = vpop.f32.mrb[0].mxu0
        %v649 = vadd.f32 0.0, %v648
        %v650 = vpop.f32.mrb[0].mxu0
        %v651 = vpop.f32.mrb[0].mxu0
        %v652 = vadd.f32 0.0, %v651
        %v653 = vpop.f32.mrb[0].mxu0
        %654 = vmatprep.mubr.bf16.mxu0 %v455
        %655 = vmatmul.mubr.bf16.gmra.mrb[0].mxu0 %v454
        %v656 = vpop.f32.mrb[0].mxu0
        %v657 = vadd.f32 0.0, %v656
        %v658 = vpop.f32.mrb[0].mxu0
        %v659 = vpop.f32.mrb[0].mxu0
        %v660 = vadd.f32 0.0, %v659
        %v661 = vpop.f32.mrb[0].mxu0
        %662 = vmatprep.mubr.bf16.mxu0 %v457
        %663 = vmatmul.mubr.bf16.gmra.mrb[0].mxu0 %v456
        %v664 = vpop.f32.mrb[0].mxu0
        %v665 = vadd.f32 0.0, %v664
        %v666 = vpop.f32.mrb[0].mxu0
        %v667 = vpop.f32.mrb[0].mxu0
        %v668 = vadd.f32 0.0, %v667
        %v669 = vpop.f32.mrb[0].mxu0
        %670 = vmatprep.mubr.bf16.mxu0 %v459
        %671 = vmatmul.mubr.bf16.gmra.mrb[0].mxu0 %v458
        %v672 = vpop.f32.mrb[0].mxu0
        %v673 = vadd.f32 0.0, %v672
        %v674 = vpop.f32.mrb[0].mxu0
        %v675 = vpop.f32.mrb[0].mxu0
        %v676 = vadd.f32 0.0, %v675
        %v677 = vpop.f32.mrb[0].mxu0
        %678 = vmatprep.mubr.bf16.mxu0 %v461
        %679 = vmatmul.mubr.bf16.gmra.mrb[0].mxu0 %v460
        %v680 = vpop.f32.mrb[0].mxu0
        %v681 = vadd.f32 0.0, %v680
        %v682 = vpop.f32.mrb[0].mxu0
        %v683 = vpop.f32.mrb[0].mxu0
        %v684 = vadd.f32 0.0, %v683
        %v685 = vpop.f32.mrb[0].mxu0
        %686 = vdwg.mxu0
        %v687 = vmax.f32 %v625, 0.0
        %v688 = vmax.f32 %v628, 0.0
        %v689 = vmax.f32 %v633, 0.0
        %v690 = vmax.f32 %v636, 0.0
        %v691 = vmax.f32 %v641, 0.0
        %v692 = vmax.f32 %v644, 0.0
        %v693 = vmax.f32 %v649, 0.0
        %v694 = vmax.f32 %v652, 0.0
        %v695 = vmax.f32 %v657, 0.0
        %v696 = vmax.f32 %v660, 0.0
        %v697 = vmax.f32 %v665, 0.0
        %v698 = vmax.f32 %v668, 0.0
        %v699 = vmax.f32 %v673, 0.0
        %v700 = vmax.f32 %v676, 0.0
        %v701 = vmax.f32 %v681, 0.0
        %v702 = vmax.f32 %v684, 0.0
        %703 = vst [vmem:[%s164] sm:$0xff] %v687
        %704 = vst [vmem:[%s164 + $0x8] sm:$0xff] %v688
        %705 = vst [vmem:[%s164 + $0x10] sm:$0xff] %v689
        %706 = vst [vmem:[%s164 + $0x18] sm:$0xff] %v690
        %707 = vst [vmem:[%s164 + $0x20] sm:$0xff] %v691
        %708 = vst [vmem:[%s164 + $0x28] sm:$0xff] %v692
        %709 = vst [vmem:[%s164 + $0x30] sm:$0xff] %v693
        %710 = vst [vmem:[%s164 + $0x38] sm:$0xff] %v694
        %711 = vst [vmem:[%s164 + $0x40] sm:$0xff] %v695
        %712 = vst [vmem:[%s164 + $0x48] sm:$0xff] %v696
        %713 = vst [vmem:[%s164 + $0x50] sm:$0xff] %v697
        %714 = vst [vmem:[%s164 + $0x58] sm:$0xff] %v698
        %715 = vst [vmem:[%s164 + $0x60] sm:$0xff] %v699
        %716 = vst [vmem:[%s164 + $0x68] sm:$0xff] %v700
        %717 = vst [vmem:[%s164 + $0x70] sm:$0xff] %v701
        %718 = vst [vmem:[%s164 + $0x78] sm:$0xff] %v702
        %s719 = sand.u32 %s93, 1
        %s720 = scalar_lea.sflag [#allocation3], %s719
        %s721 = sand.u32 %s93, 1
        %s722 = smul.addr %s721, 128
        %s723 = scalar_lea.vmem [#allocation2], %s722
        // Predicated region
        $region33: #{mlp_forward.1} parent=31 // pred_check
          %p724 = pneg %p103
        $region34: #{mlp_forward.1} parent=31 // pred_check_branch
          %726 = sbr.rel (%p724) target = $region36
        $region35: #{mlp_forward.1} parent=31 // pred_region
          %s727 = smul.u32 16, %s17
          %s729 = ssub.s32 2048, 2048
          %730 = vsyncadd %s720, %s729
          %s731 = smul.addr %s727, 128
          %s732 = scalar_lea.hbm %s3, %s731
          %s733 = sshll.u32 %s723, 4
          %s734 = int_to_ptr.vmem [resolvable:$true] %s733
          %739 = dma.vmem_to_hbm [thread:$0]  %s734, 2048, %s732, %s720, 128, 128, 8
        $region36: #{mlp_forward.1} parent=31 // pred_fallthru
          _
      $region32: #{mlp_forward.1} parent=5 // pred_fallthru
        _
      %p740 = scmp.le.s32.totalorder 2, %s12
      // Predicated region
      $region37: #{mlp_forward.1} parent=5 // pred_check
        %p741 = pneg %p740
      $region38: #{mlp_forward.1} parent=5 // pred_check_branch
        %743 = sbr.rel (%p741) target = $region40
      $region39: #{mlp_forward.1} parent=5 // pred_region
        %s744 = ssub.s32 %s12, 2
        // Predicated region
        $region41: #{mlp_forward.1} parent=39 // pred_check
          %p745 = pneg %p109
        $region42: #{mlp_forward.1} parent=39 // pred_check_branch
          %747 = sbr.rel (%p745) target = $region44
        $region43: #{mlp_forward.1} parent=39 // pred_region
          %s748 = sand.u32 %s94, 1
          %s749 = scalar_lea.sflag [#allocation3], %s748
          %s750 = sand.u32 %s94, 1
          %s751 = smul.addr %s750, 128
          %s752 = scalar_lea.vmem [#allocation2], %s751
          %753 = dma.done %s749, 2048
        $region44: #{mlp_forward.1} parent=39 // pred_fallthru
          _
      $region40: #{mlp_forward.1} parent=5 // pred_fallthru
        _
    $region6: #{mlp_forward.1} parent=1 // loop_footer
      %s16 = sadd.s32 1, %s12
    $region7: #{mlp_forward.1} parent=1 // loop_footer_branch
      %11 = sbr.rel target = $region3
    $region8: #{mlp_forward.1} parent=1 // loop_exit
      _
    %754 = vsyncpa [#allocation3], 1
    %s755 = scalar_lea.sflag [#allocation3], 1
    %756 = vsyncpa %s755, 1

</llo_original>
